<compile_context>
chip_gen: v7x
topology: tpu7x:2x2x1
jax: 0.10.0
libtpu: 0.0.40
codegen_flags: <defaults>
</compile_context>

<pallas_src>
import functools

import jax
import jax.numpy as jnp
from jax.experimental import pallas as pl
from jax.experimental.pallas import tpu as pltpu

LANE = 128  # TPU lane width; hidden/action feature dims are zero-padded to this.


def _round_up(n, m):
    return ((n + m - 1) // m) * m


def policy_kernel(x_ref, w1_ref, w_ref, b_ref, out_ref):
    """x_ref: (TB, K_PAD); w1_ref: (K_PAD, 128); w_ref: (3, 128, 128);
    b_ref: (4, 1, 128); out_ref: (TB, 128)."""
    x = x_ref[...]

    # Linear -> ReLU (x3). Padded rows/cols of the weight slabs are zero, so padding
    # is inert through the MLP.
    h = jnp.maximum(
        jnp.dot(x, w1_ref[...], preferred_element_type=jnp.float32) + b_ref[0], 0.0)
    h = jnp.maximum(
        jnp.dot(h, w_ref[0], preferred_element_type=jnp.float32) + b_ref[1], 0.0)
    h = jnp.maximum(
        jnp.dot(h, w_ref[1], preferred_element_type=jnp.float32) + b_ref[2], 0.0)

    # Final Linear. The action mask (-1e30 on padded lanes) is baked into b_ref[3],
    # so no iota/compare/select is needed here.
    logits = jnp.dot(h, w_ref[2], preferred_element_type=jnp.float32) + b_ref[3]

    # Numerically stable softmax over dim=1 (padded lanes contribute exp(-huge)=0).
    m = jnp.max(logits, axis=1, keepdims=True)
    e = jnp.exp(logits - m)
    denom = jnp.sum(e, axis=1, keepdims=True)
    # approx=False keeps the 1e-5 tolerance; flip to approx=True only with a looser check.
    out_ref[...] = (e * pl.reciprocal(denom, approx=False)).astype(out_ref.dtype)


def pack_params(params, lane=LANE):
    """Pack [(W, b)] (W: (in, out), b: (1, out) or (out,)) into padded VMEM slabs.

    Call ONCE at init (not per forward). Returns (w1_slab, w_slab, b_slab) where
      w1_slab: (round_up(state_size, 8), lane)   -- layer 1 weights
      w_slab : (n_layers - 1, lane, lane)        -- layers 2..n weights
      b_slab : (n_layers, 1, lane)               -- all biases; last one carries the
                                                    -1e30 softmax mask on padded lanes.
    """
    n = len(params)
    w1, b1 = params[0]
    state_size, hidden = w1.shape
    k_pad = _round_up(state_size, 8)

    w1_slab = jnp.zeros((k_pad, lane), jnp.float32)
    w1_slab = w1_slab.at[:state_size, :hidden].set(w1.astype(jnp.float32))

    w_slab = jnp.zeros((n - 1, lane, lane), jnp.float32)
    b_slab = jnp.zeros((n, 1, lane), jnp.float32)
    b_slab = b_slab.at[0, 0, :b1.size].set(jnp.reshape(b1, (-1,)).astype(jnp.float32))
    for i, (w, b) in enumerate(params[1:], start=1):
        fin, fout = w.shape
        w_slab = w_slab.at[i - 1, :fin, :fout].set(w.astype(jnp.float32))
        b_slab = b_slab.at[i, 0, :fout].set(jnp.reshape(b, (-1,)).astype(jnp.float32))

    # Bake the action mask into the final bias: padded logit lanes become -1e30,
    # so exp(logit - rowmax) == 0 there and the softmax is unchanged. Keep f32.
    action_size = params[-1][0].shape[1]
    b_slab = b_slab.at[n - 1, 0, action_size:].set(jnp.float32(-1e30))
    return w1_slab, w_slab, b_slab


def _choose_tb(batch, tb, cap=1024):
    """Pick the batch tile: multiple of 8, capped at `cap`, and (for v7x's two
    TensorCores) at least 2 grid steps whenever the batch allows it."""
    if tb is not None:
        return tb
    tb = min(cap, _round_up(max(batch, 1), 8))
    if batch > 8:
        while tb > 8 and _round_up(batch, tb) // tb < 2:
            tb = _round_up(tb // 2, 8)
    return tb


@functools.partial(jax.jit, static_argnames=("action_size", "tb"))
def policy_network_forward(x, w1_slab, w_slab, b_slab, *, action_size, tb=None):
    """x: (batch, state_size) f32. Slabs from pack_params(). Returns (batch, action_size)."""
    batch, state_size = x.shape
    k_pad = w1_slab.shape[0]
    n_layers = b_slab.shape[0]

    tb = _choose_tb(batch, tb)
    padded_batch = _round_up(max(batch, 1), tb)

    # Only pad batch rows + the tiny K dim (state_size -> multiple of 8); fuses under jit.
    if padded_batch != batch or k_pad != state_size:
        x_in = jnp.zeros((padded_batch, k_pad), jnp.float32)
        x_in = x_in.at[:batch, :state_size].set(x.astype(jnp.float32))
    else:
        x_in = x.astype(jnp.float32)

    out_pad = pl.pallas_call(
        policy_kernel,
        out_shape=jax.ShapeDtypeStruct((padded_batch, LANE), jnp.float32),
        grid_spec=pltpu.PrefetchScalarGridSpec(
            num_scalar_prefetch=0,
            grid=(padded_batch // tb,),
            in_specs=[
                # batch tile, streamed across the grid
                pl.BlockSpec((tb, k_pad), lambda i: (i, 0)),
                # packed weights / biases: constant block index -> stay VMEM-resident
                pl.BlockSpec((k_pad, LANE), lambda i: (0, 0)),
                pl.BlockSpec((n_layers - 1, LANE, LANE), lambda i: (0, 0, 0)),
                pl.BlockSpec((n_layers, 1, LANE), lambda i: (0, 0, 0)),
            ],
            out_specs=pl.BlockSpec((tb, LANE), lambda i: (i, 0)),
        ),
        compiler_params=pltpu.CompilerParams(
            dimension_semantics=("parallel",)),
    )(x_in, w1_slab, w_slab, b_slab)

    # Under the same jit, this slice fuses with the consumer instead of a standalone pass.
    return out_pad[:batch, :action_size]


def init_params(key, state_size, action_size, hidden_size=8):
    """Deterministic init mimicking nn.Linear default (uniform +/- 1/sqrt(fan_in))."""
    dims = [(state_size, hidden_size),
            (hidden_size, hidden_size),
            (hidden_size, hidden_size),
            (hidden_size, action_size)]
    params = []
    for (fan_in, fan_out) in dims:
        key, kw, kb = jax.random.split(key, 3)
        bound = 1.0 / jnp.sqrt(jnp.float32(fan_in))
        w = jax.random.uniform(kw, (fan_in, fan_out), jnp.float32, -bound, bound)
        b = jax.random.uniform(kb, (1, fan_out), jnp.float32, -bound, bound)
        params.append((w, b))
    return params


def reference_forward(x, params):
    h = x
    for i, (w, b) in enumerate(params):
        h = h @ w + b
        if i < len(params) - 1:
            h = jnp.maximum(h, 0.0)
    return jax.nn.softmax(h, axis=1)


if __name__ == "__main__":
    key = jax.random.PRNGKey(0)
    batch, state_size, action_size = 4, 6, 3

    kx, kp, kx2, kx3 = jax.random.split(key, 4)
    x = jax.random.normal(kx, (batch, state_size), jnp.float32)
    params = init_params(kp, state_size, action_size)

    # Pack ONCE (hoisted out of the per-call path, per perf review).
    w1_slab, w_slab, b_slab = jax.block_until_ready(pack_params(params))

    out = policy_network_forward(x, w1_slab, w_slab, b_slab, action_size=action_size)
    out = jax.block_until_ready(out)

    ref = reference_forward(x, params)
    assert out.shape == (batch, action_size)
    assert jnp.allclose(out, ref, atol=1e-5, rtol=1e-5), "mismatch vs reference"
    assert jnp.allclose(jnp.sum(out, axis=1), 1.0, atol=1e-5), "rows must sum to 1"

    # Larger batch with an explicit small tile: exercises the multi-step grid and
    # ragged-batch padding path.
    x2 = jax.random.normal(kx2, (20, state_size), jnp.float32)
    out2 = jax.block_until_ready(
        policy_network_forward(x2, w1_slab, w_slab, b_slab, action_size=action_size, tb=8))
    ref2 = reference_forward(x2, params)
    assert out2.shape == (20, action_size)
    assert jnp.allclose(out2, ref2, atol=1e-5, rtol=1e-5), "mismatch vs reference (gridded)"

    # Auto tile selection: exercises the >=2-step grid path (v7x dual-TensorCore split).
    x3 = jax.random.normal(kx3, (300, state_size), jnp.float32)
    out3 = jax.block_until_ready(
        policy_network_forward(x3, w1_slab, w_slab, b_slab, action_size=action_size))
    ref3 = reference_forward(x3, params)
    assert out3.shape == (300, action_size)
    assert jnp.allclose(out3, ref3, atol=1e-5, rtol=1e-5), "mismatch vs reference (auto tile)"

    print("KERNEL_OK")
</pallas_src>

<mosaic_0001>
module attributes {stable_mosaic.version = 11 : i64} {
  func.func @policy_kernel(%arg0: i32, %arg1: memref<8x8xf32, #tpu.memory_space<vmem>>, %arg2: memref<8x128xf32, #tpu.memory_space<vmem>>, %arg3: memref<3x128x128xf32, #tpu.memory_space<vmem>>, %arg4: memref<4x1x128xf32, #tpu.memory_space<vmem>>, %arg5: memref<8x128xf32, #tpu.memory_space<vmem>>) attributes {dimension_semantics = [#tpu.dimension_semantics<parallel>], iteration_bounds = array<i64: 1>, scalar_prefetch = 0 : i64, scratch_operands = 0 : i64, tpu.core_type = #tpu.core_type<tc>, window_params = [{transform_indices = @transform_0, window_bounds = array<i64: 8, 8>}, {pipeline_mode = #tpu.pipeline_mode<synchronous>, transform_indices = @transform_1, window_bounds = array<i64: 8, 128>}, {pipeline_mode = #tpu.pipeline_mode<synchronous>, transform_indices = @transform_2, window_bounds = array<i64: 3, 128, 128>}, {pipeline_mode = #tpu.pipeline_mode<synchronous>, transform_indices = @transform_3, window_bounds = array<i64: 4, 1, 128>}, {transform_indices = @transform_4, window_bounds = array<i64: 8, 128>}]} {
    %c0 = arith.constant 0 : index
    %c0_0 = arith.constant 0 : index
    %0 = vector.load %arg1[%c0, %c0_0] : memref<8x8xf32, #tpu.memory_space<vmem>>, vector<8x8xf32>
    %c0_1 = arith.constant 0 : index
    %c0_2 = arith.constant 0 : index
    %1 = vector.load %arg2[%c0_1, %c0_2] : memref<8x128xf32, #tpu.memory_space<vmem>>, vector<8x128xf32>
    %cst = arith.constant dense<0.000000e+00> : vector<8x128xf32>
    %2 = tpu.matmul %0, %1, %cst {dimension_numbers = #tpu.dot_dimension_numbers<[1], [0], [0], [1], [0, 0, 1, 1], [], []>} : vector<8x8xf32>, vector<8x128xf32>, vector<8x128xf32> -> vector<8x128xf32>
    %c0_3 = arith.constant 0 : index
    %c0_4 = arith.constant 0 : index
    %c0_5 = arith.constant 0 : index
    %3 = vector.load %arg4[%c0_3, %c0_4, %c0_5] : memref<4x1x128xf32, #tpu.memory_space<vmem>>, vector<1x1x128xf32>
    %4 = vector.shape_cast %3 : vector<1x1x128xf32> to vector<1x128xf32>
    %5 = vector.broadcast %4 : vector<1x128xf32> to vector<8x128xf32>
    %6 = arith.addf %2, %5 : vector<8x128xf32>
    %cst_6 = arith.constant 0.000000e+00 : f32
    %7 = vector.broadcast %cst_6 : f32 to vector<8x128xf32>
    %8 = arith.maximumf %6, %7 : vector<8x128xf32>
    %c0_7 = arith.constant 0 : index
    %c0_8 = arith.constant 0 : index
    %c0_9 = arith.constant 0 : index
    %9 = vector.load %arg3[%c0_7, %c0_8, %c0_9] : memref<3x128x128xf32, #tpu.memory_space<vmem>>, vector<1x128x128xf32>
    %10 = vector.shape_cast %9 : vector<1x128x128xf32> to vector<128x128xf32>
    %cst_10 = arith.constant dense<0.000000e+00> : vector<8x128xf32>
    %11 = tpu.matmul %8, %10, %cst_10 {dimension_numbers = #tpu.dot_dimension_numbers<[1], [0], [0], [1], [0, 0, 1, 1], [], []>} : vector<8x128xf32>, vector<128x128xf32>, vector<8x128xf32> -> vector<8x128xf32>
    %c1 = arith.constant 1 : index
    %c0_11 = arith.constant 0 : index
    %c0_12 = arith.constant 0 : index
    %12 = vector.load %arg4[%c1, %c0_11, %c0_12] : memref<4x1x128xf32, #tpu.memory_space<vmem>>, vector<1x1x128xf32>
    %13 = vector.shape_cast %12 : vector<1x1x128xf32> to vector<1x128xf32>
    %14 = vector.broadcast %13 : vector<1x128xf32> to vector<8x128xf32>
    %15 = arith.addf %11, %14 : vector<8x128xf32>
    %cst_13 = arith.constant 0.000000e+00 : f32
    %16 = vector.broadcast %cst_13 : f32 to vector<8x128xf32>
    %17 = arith.maximumf %15, %16 : vector<8x128xf32>
    %c1_14 = arith.constant 1 : index
    %c0_15 = arith.constant 0 : index
    %c0_16 = arith.constant 0 : index
    %18 = vector.load %arg3[%c1_14, %c0_15, %c0_16] : memref<3x128x128xf32, #tpu.memory_space<vmem>>, vector<1x128x128xf32>
    %19 = vector.shape_cast %18 : vector<1x128x128xf32> to vector<128x128xf32>
    %cst_17 = arith.constant dense<0.000000e+00> : vector<8x128xf32>
    %20 = tpu.matmul %17, %19, %cst_17 {dimension_numbers = #tpu.dot_dimension_numbers<[1], [0], [0], [1], [0, 0, 1, 1], [], []>} : vector<8x128xf32>, vector<128x128xf32>, vector<8x128xf32> -> vector<8x128xf32>
    %c2 = arith.constant 2 : index
    %c0_18 = arith.constant 0 : index
    %c0_19 = arith.constant 0 : index
    %21 = vector.load %arg4[%c2, %c0_18, %c0_19] : memref<4x1x128xf32, #tpu.memory_space<vmem>>, vector<1x1x128xf32>
    %22 = vector.shape_cast %21 : vector<1x1x128xf32> to vector<1x128xf32>
    %23 = vector.broadcast %22 : vector<1x128xf32> to vector<8x128xf32>
    %24 = arith.addf %20, %23 : vector<8x128xf32>
    %cst_20 = arith.constant 0.000000e+00 : f32
    %25 = vector.broadcast %cst_20 : f32 to vector<8x128xf32>
    %26 = arith.maximumf %24, %25 : vector<8x128xf32>
    %c2_21 = arith.constant 2 : index
    %c0_22 = arith.constant 0 : index
    %c0_23 = arith.constant 0 : index
    %27 = vector.load %arg3[%c2_21, %c0_22, %c0_23] : memref<3x128x128xf32, #tpu.memory_space<vmem>>, vector<1x128x128xf32>
    %28 = vector.shape_cast %27 : vector<1x128x128xf32> to vector<128x128xf32>
    %cst_24 = arith.constant dense<0.000000e+00> : vector<8x128xf32>
    %29 = tpu.matmul %26, %28, %cst_24 {dimension_numbers = #tpu.dot_dimension_numbers<[1], [0], [0], [1], [0, 0, 1, 1], [], []>} : vector<8x128xf32>, vector<128x128xf32>, vector<8x128xf32> -> vector<8x128xf32>
    %c3 = arith.constant 3 : index
    %c0_25 = arith.constant 0 : index
    %c0_26 = arith.constant 0 : index
    %30 = vector.load %arg4[%c3, %c0_25, %c0_26] : memref<4x1x128xf32, #tpu.memory_space<vmem>>, vector<1x1x128xf32>
    %31 = vector.shape_cast %30 : vector<1x1x128xf32> to vector<1x128xf32>
    %32 = vector.broadcast %31 : vector<1x128xf32> to vector<8x128xf32>
    %33 = arith.addf %29, %32 : vector<8x128xf32>
    %cst_27 = arith.constant dense<0xFF800000> : vector<8xf32>
    %34 = vector.multi_reduction <maximumf>, %33, %cst_27 [1] : vector<8x128xf32> to vector<8xf32>
    %35 = vector.shape_cast %34 : vector<8xf32> to vector<8x1xf32>
    %36 = vector.broadcast %35 : vector<8x1xf32> to vector<8x128xf32>
    %37 = arith.subf %33, %36 : vector<8x128xf32>
    %38 = math.exp %37 : vector<8x128xf32>
    %cst_28 = arith.constant dense<0.000000e+00> : vector<8xf32>
    %39 = vector.multi_reduction <add>, %38, %cst_28 [1] : vector<8x128xf32> to vector<8xf32>
    %40 = vector.shape_cast %39 : vector<8xf32> to vector<8x1xf32>
    %41 = tpu.reciprocal %40 : vector<8x1xf32> -> vector<8x1xf32>
    %42 = vector.broadcast %41 : vector<8x1xf32> to vector<8x128xf32>
    %43 = arith.mulf %38, %42 : vector<8x128xf32>
    %c0_29 = arith.constant 0 : index
    %c0_30 = arith.constant 0 : index
    %44 = vector.load %arg5[%c0_29, %c0_30] : memref<8x128xf32, #tpu.memory_space<vmem>>, vector<8x128xf32>
    tpu.vector_store %arg5[%c0_29, %c0_30], %43 {strides = array<i32>} : memref<8x128xf32, #tpu.memory_space<vmem>>, vector<8x128xf32>,
    return
  }
  func.func @transform_0(%arg0: i32) -> (i32, i32) {
    %c0_i32 = arith.constant 0 : i32
    %c0_i32_0 = arith.constant 0 : i32
    return %arg0, %c0_i32 : i32, i32
  }
  func.func @transform_1(%arg0: i32) -> (i32, i32) {
    %c0_i32 = arith.constant 0 : i32
    %c0_i32_0 = arith.constant 0 : i32
    %c0_i32_1 = arith.constant 0 : i32
    return %c0_i32, %c0_i32_0 : i32, i32
  }
  func.func @transform_2(%arg0: i32) -> (i32, i32, i32) {
    %c0_i32 = arith.constant 0 : i32
    %c0_i32_0 = arith.constant 0 : i32
    %c0_i32_1 = arith.constant 0 : i32
    %c0_i32_2 = arith.constant 0 : i32
    return %c0_i32, %c0_i32_0, %c0_i32_1 : i32, i32, i32
  }
  func.func @transform_3(%arg0: i32) -> (i32, i32, i32) {
    %c0_i32 = arith.constant 0 : i32
    %c0_i32_0 = arith.constant 0 : i32
    %c0_i32_1 = arith.constant 0 : i32
    %c0_i32_2 = arith.constant 0 : i32
    return %c0_i32, %c0_i32_0, %c0_i32_1 : i32, i32, i32
  }
  func.func @transform_4(%arg0: i32) -> (i32, i32) {
    %c0_i32 = arith.constant 0 : i32
    %c0_i32_0 = arith.constant 0 : i32
    return %arg0, %c0_i32 : i32, i32
  }
}

</mosaic_0001>

<llo_original>
// kernel: policy_network_forward.1
$region0: #{policy_network_forward.1}
  #allocation0 [shape = 'u32[]', space=smem, size = 0x4, offset = 0x4, fixed_abs, tag = 'smem constant byte address 0x4 - core index']
  #allocation1 [shape = 'u32[144,128]{1,0:T(1,128)}', space=vmem, size = 0x12000, scoped, tag = 'internal scratch']
  %s0 = inlined_call_operand.vmem [shape: f32[8,8], index: 0, kind: input, shape index: {}]
  %s1 = inlined_call_operand.vmem [shape: f32[8,128], index: 1, kind: input, shape index: {}]
  %s2 = inlined_call_operand.hbm [shape: f32[3,128,128], index: 2, kind: input, shape index: {}]
  %s3 = inlined_call_operand.vmem [shape: f32[4,1,128], index: 3, kind: input, shape index: {}]
  %s4 = inlined_call_operand.vmem [shape: f32[8,128], index: 4, kind: output, shape index: {}]
  %s5 = sld [smem:[#allocation0]]
  $region30: #{policy_network_forward.1} parent=0
    _
  %s7 = ssub.s32 1, %s5
  %s8 = scalar_select 0, %s7, %s5
  $region1: #{policy_network_forward.1} parent=0
    #allocation2 [shape = 'u8[196608]{0}', space=vmem, size = 0x30000, scoped, tag = 'input window, operand 2, single buffered']
    #allocation3 [shape = 's32[1]{0}', space=sflag, size = 0x4, scoped, tag = 'scoped memory for policy_network_forward.1']
    %9 = vsyncpa [#allocation3], 0
    // Predicated region
    $region2: #{policy_network_forward.1} parent=1 // pred_check
      _
    $region3: #{policy_network_forward.1} parent=1 // pred_check_branch
      %11 = sbr.rel (0) target = $region5
    $region4: #{policy_network_forward.1} parent=1 // pred_region
      _
    $region5: #{policy_network_forward.1} parent=1 // pred_fallthru
      _
    // Predicated region
    $region6: #{policy_network_forward.1} parent=1 // pred_check
      _
    $region7: #{policy_network_forward.1} parent=1 // pred_check_branch
      %13 = sbr.rel (0) target = $region9
    $region8: #{policy_network_forward.1} parent=1 // pred_region
      _
    $region9: #{policy_network_forward.1} parent=1 // pred_fallthru
      _
    // Predicated region
    $region10: #{policy_network_forward.1} parent=1 // pred_check
      _
    $region11: #{policy_network_forward.1} parent=1 // pred_check_branch
      %15 = sbr.rel (0) target = $region13
    $region12: #{policy_network_forward.1} parent=1 // pred_region
      %s17 = ssub.s32 6144, 6144
      %18 = vsyncadd [#allocation3], %s17
      %s19 = sshll.u32 [#allocation2], 4
      %s20 = int_to_ptr.vmem [resolvable:$true] %s19
      %25 = dma.hbm_to_vmem [thread:$0]  %s2, 6144, %s20, [#allocation3], 128, 128, 8
    $region13: #{policy_network_forward.1} parent=1 // pred_fallthru
      _
    // Predicated region
    $region14: #{policy_network_forward.1} parent=1 // pred_check
      _
    $region15: #{policy_network_forward.1} parent=1 // pred_check_branch
      %27 = sbr.rel (0) target = $region17
    $region16: #{policy_network_forward.1} parent=1 // pred_region
      _
    $region17: #{policy_network_forward.1} parent=1 // pred_fallthru
      _
    // Predicated region
    $region18: #{policy_network_forward.1} parent=1 // pred_check
      _
    $region19: #{policy_network_forward.1} parent=1 // pred_check_branch
      %29 = sbr.rel (0) target = $region21
    $region20: #{policy_network_forward.1} parent=1 // pred_region
      %30 = dma.done [#allocation3], 6144
    $region21: #{policy_network_forward.1} parent=1 // pred_fallthru
      _
    %v31 = vld [vmem:[%s0] sm:$0xff]
    %v32 = vld [vmem:[%s1] sm:$0xff]
    %v33 = vld [vmem:[%s3] sm:$0x1]
    %v35 = vlaneseq
    %v36 = vshrl.u32 %v35, 7
    %v37 = vsub.s32 0, %v36
    %v38 = vrot.slane %v33, %v37
    %vm40 = vcmask 64512
    %v42 = vsel %vm40, %v31, 0
    %44 = vmatprep.subr.mxu0 0.0
    %45 = vmatpush1.msra.mxu0 %v32
    %46 = vmatprep.subr.mxu0 0.0
    %47 = vmatpush1.msra.mxu0 0.0
    %48 = vmatprep.subr.mxu0 0.0
    %49 = vmatpush1.msra.mxu0 0.0
    %50 = vmatprep.subr.mxu0 0.0
    %51 = vmatpush1.msra.mxu0 0.0
    %52 = vmatprep.subr.mxu0 0.0
    %53 = vmatpush1.msra.mxu0 0.0
    %54 = vmatprep.subr.mxu0 0.0
    %55 = vmatpush1.msra.mxu0 0.0
    %56 = vmatprep.subr.mxu0 0.0
    %57 = vmatpush1.msra.mxu0 0.0
    %58 = vmatprep.subr.mxu0 0.0
    %59 = vmatpush1.msra.mxu0 0.0
    %60 = vmatprep.subr.mxu0 0.0
    %61 = vmatpush1.msra.mxu0 0.0
    %62 = vmatprep.subr.mxu0 0.0
    %63 = vmatpush1.msra.mxu0 0.0
    %64 = vmatprep.subr.mxu0 0.0
    %65 = vmatpush1.msra.mxu0 0.0
    %66 = vmatprep.subr.mxu0 0.0
    %67 = vmatpush1.msra.mxu0 0.0
    %68 = vmatprep.subr.mxu0 0.0
    %69 = vmatpush1.msra.mxu0 0.0
    %70 = vmatprep.subr.mxu0 0.0
    %71 = vmatpush1.msra.mxu0 0.0
    %72 = vmatprep.subr.mxu0 0.0
    %73 = vmatpush1.msra.mxu0 0.0
    %74 = vmatprep.subr.mxu0 0.0
    %75 = vmatpush1.msra.mxu0 0.0
    %76 = vmatprep.subr.mxu0 0.0
    %77 = vmatpush1.msra.mxu0 0.0
    %78 = vmatprep.subr.mxu0 0.0
    %79 = vmatpush1.msra.mxu0 0.0
    %80 = vmatprep.subr.mxu0 0.0
    %81 = vmatpush1.msra.mxu0 0.0
    %82 = vmatprep.subr.mxu0 0.0
    %83 = vmatpush1.msra.mxu0 0.0
    %84 = vmatprep.subr.mxu0 0.0
    %85 = vmatpush1.msra.mxu0 0.0
    %86 = vmatprep.subr.mxu0 0.0
    %87 = vmatpush1.msra.mxu0 0.0
    %88 = vmatprep.subr.mxu0 0.0
    %89 = vmatpush1.msra.mxu0 0.0
    %90 = vmatprep.subr.mxu0 0.0
    %91 = vmatpush1.msra.mxu0 0.0
    %92 = vmatprep.subr.mxu0 0.0
    %93 = vmatpush1.msra.mxu0 0.0
    %94 = vmatprep.subr.mxu0 0.0
    %95 = vmatpush1.msra.mxu0 0.0
    %96 = vmatprep.subr.mxu0 0.0
    %97 = vmatpush1.msra.mxu0 0.0
    %98 = vmatprep.subr.mxu0 0.0
    %99 = vmatpush1.msra.mxu0 0.0
    %100 = vmatprep.subr.mxu0 0.0
    %101 = vmatpush1.msra.mxu0 0.0
    %102 = vmatprep.subr.mxu0 0.0
    %103 = vmatpush1.msra.mxu0 0.0
    %104 = vmatprep.subr.mxu0 0.0
    %105 = vmatpush1.msra.mxu0 0.0
    %106 = vmatprep.subr.mxu0 0.0
    %107 = vmatpush1.msra.mxu0 0.0
    %108 = vmatprep.mubr.f32.mxu0 0.0
    %109 = vmatmul.mubr.f32.gmra.mrb[0].mxu0 %v42
    %v110 = vpop.f32.mrb[0].mxu0
    %v111 = vadd.f32 %v38, %v110
    %v112 = vpop.f32.mrb[0].mxu0
    %113 = vdwg.mxu0
    %v114 = vmax.f32 %v111, 0.0
    %v115 = vld [vmem:[#allocation2] sm:$0xff]
    %v116 = vld [vmem:[#allocation2 + $0x8] sm:$0xff]
    %v117 = vld [vmem:[#allocation2 + $0x10] sm:$0xff]
    %v118 = vld [vmem:[#allocation2 + $0x18] sm:$0xff]
    %v119 = vld [vmem:[#allocation2 + $0x20] sm:$0xff]
    %v120 = vld [vmem:[#allocation2 + $0x28] sm:$0xff]
    %v121 = vld [vmem:[#allocation2 + $0x30] sm:$0xff]
    %v122 = vld [vmem:[#allocation2 + $0x38] sm:$0xff]
    %v123 = vld [vmem:[#allocation2 + $0x40] sm:$0xff]
    %v124 = vld [vmem:[#allocation2 + $0x48] sm:$0xff]
    %v125 = vld [vmem:[#allocation2 + $0x50] sm:$0xff]
    %v126 = vld [vmem:[#allocation2 + $0x58] sm:$0xff]
    %v127 = vld [vmem:[#allocation2 + $0x60] sm:$0xff]
    %v128 = vld [vmem:[#allocation2 + $0x68] sm:$0xff]
    %v129 = vld [vmem:[#allocation2 + $0x70] sm:$0xff]
    %v130 = vld [vmem:[#allocation2 + $0x78] sm:$0xff]
    %s131 = scalar_lea.vmem %s3, 1
    %v132 = vld [vmem:[%s131] sm:$0x1]
    %v134 = vlaneseq
    %v135 = vshrl.u32 %v134, 7
    %v136 = vsub.s32 0, %v135
    %v137 = vrot.slane %v132, %v136
    %139 = vmatprep.subr.mxu0 0.0
    %140 = vmatpush1.msra.mxu0 %v115
    %141 = vmatprep.subr.mxu0 0.0
    %142 = vmatpush1.msra.mxu0 %v116
    %143 = vmatprep.subr.mxu0 0.0
    %144 = vmatpush1.msra.mxu0 %v117
    %145 = vmatprep.subr.mxu0 0.0
    %146 = vmatpush1.msra.mxu0 %v118
    %147 = vmatprep.subr.mxu0 0.0
    %148 = vmatpush1.msra.mxu0 %v119
    %149 = vmatprep.subr.mxu0 0.0
    %150 = vmatpush1.msra.mxu0 %v120
    %151 = vmatprep.subr.mxu0 0.0
    %152 = vmatpush1.msra.mxu0 %v121
    %153 = vmatprep.subr.mxu0 0.0
    %154 = vmatpush1.msra.mxu0 %v122
    %155 = vmatprep.subr.mxu0 0.0
    %156 = vmatpush1.msra.mxu0 %v123
    %157 = vmatprep.subr.mxu0 0.0
    %158 = vmatpush1.msra.mxu0 %v124
    %159 = vmatprep.subr.mxu0 0.0
    %160 = vmatpush1.msra.mxu0 %v125
    %161 = vmatprep.subr.mxu0 0.0
    %162 = vmatpush1.msra.mxu0 %v126
    %163 = vmatprep.subr.mxu0 0.0
    %164 = vmatpush1.msra.mxu0 %v127
    %165 = vmatprep.subr.mxu0 0.0
    %166 = vmatpush1.msra.mxu0 %v128
    %167 = vmatprep.subr.mxu0 0.0
    %168 = vmatpush1.msra.mxu0 %v129
    %169 = vmatprep.subr.mxu0 0.0
    %170 = vmatpush1.msra.mxu0 %v130
    %171 = vmatprep.subr.mxu0 0.0
    %172 = vmatpush1.msra.mxu0 0.0
    %173 = vmatprep.subr.mxu0 0.0
    %174 = vmatpush1.msra.mxu0 0.0
    %175 = vmatprep.subr.mxu0 0.0
    %176 = vmatpush1.msra.mxu0 0.0
    %177 = vmatprep.subr.mxu0 0.0
    %178 = vmatpush1.msra.mxu0 0.0
    %179 = vmatprep.subr.mxu0 0.0
    %180 = vmatpush1.msra.mxu0 0.0
    %181 = vmatprep.subr.mxu0 0.0
    %182 = vmatpush1.msra.mxu0 0.0
    %183 = vmatprep.subr.mxu0 0.0
    %184 = vmatpush1.msra.mxu0 0.0
    %185 = vmatprep.subr.mxu0 0.0
    %186 = vmatpush1.msra.mxu0 0.0
    %187 = vmatprep.subr.mxu0 0.0
    %188 = vmatpush1.msra.mxu0 0.0
    %189 = vmatprep.subr.mxu0 0.0
    %190 = vmatpush1.msra.mxu0 0.0
    %191 = vmatprep.subr.mxu0 0.0
    %192 = vmatpush1.msra.mxu0 0.0
    %193 = vmatprep.subr.mxu0 0.0
    %194 = vmatpush1.msra.mxu0 0.0
    %195 = vmatprep.subr.mxu0 0.0
    %196 = vmatpush1.msra.mxu0 0.0
    %197 = vmatprep.subr.mxu0 0.0
    %198 = vmatpush1.msra.mxu0 0.0
    %199 = vmatprep.subr.mxu0 0.0
    %200 = vmatpush1.msra.mxu0 0.0
    %201 = vmatprep.subr.mxu0 0.0
    %202 = vmatpush1.msra.mxu0 0.0
    %203 = vmatprep.mubr.f32.mxu0 0.0
    %204 = vmatmul.mubr.f32.gmra.mrb[0].mxu0 %v114
    %v205 = vpop.f32.mrb[0].mxu0
    %v206 = vadd.f32 %v137, %v205
    %v207 = vpop.f32.mrb[0].mxu0
    %208 = vdwg.mxu0
    %v209 = vmax.f32 %v206, 0.0
    %s210 = scalar_lea.vmem [#allocation2], 128
    %v211 = vld [vmem:[%s210] sm:$0xff]
    %v212 = vld [vmem:[%s210 + $0x8] sm:$0xff]
    %v213 = vld [vmem:[%s210 + $0x10] sm:$0xff]
    %v214 = vld [vmem:[%s210 + $0x18] sm:$0xff]
    %v215 = vld [vmem:[%s210 + $0x20] sm:$0xff]
    %v216 = vld [vmem:[%s210 + $0x28] sm:$0xff]
    %v217 = vld [vmem:[%s210 + $0x30] sm:$0xff]
    %v218 = vld [vmem:[%s210 + $0x38] sm:$0xff]
    %v219 = vld [vmem:[%s210 + $0x40] sm:$0xff]
    %v220 = vld [vmem:[%s210 + $0x48] sm:$0xff]
    %v221 = vld [vmem:[%s210 + $0x50] sm:$0xff]
    %v222 = vld [vmem:[%s210 + $0x58] sm:$0xff]
    %v223 = vld [vmem:[%s210 + $0x60] sm:$0xff]
    %v224 = vld [vmem:[%s210 + $0x68] sm:$0xff]
    %v225 = vld [vmem:[%s210 + $0x70] sm:$0xff]
    %v226 = vld [vmem:[%s210 + $0x78] sm:$0xff]
    %s227 = scalar_lea.vmem %s3, 2
    %v228 = vld [vmem:[%s227] sm:$0x1]
    %v230 = vlaneseq
    %v231 = vshrl.u32 %v230, 7
    %v232 = vsub.s32 0, %v231
    %v233 = vrot.slane %v228, %v232
    %235 = vmatprep.subr.mxu0 0.0
    %236 = vmatpush1.msra.mxu0 %v211
    %237 = vmatprep.subr.mxu0 0.0
    %238 = vmatpush1.msra.mxu0 %v212
    %239 = vmatprep.subr.mxu0 0.0
    %240 = vmatpush1.msra.mxu0 %v213
    %241 = vmatprep.subr.mxu0 0.0
    %242 = vmatpush1.msra.mxu0 %v214
    %243 = vmatprep.subr.mxu0 0.0
    %244 = vmatpush1.msra.mxu0 %v215
    %245 = vmatprep.subr.mxu0 0.0
    %246 = vmatpush1.msra.mxu0 %v216
    %247 = vmatprep.subr.mxu0 0.0
    %248 = vmatpush1.msra.mxu0 %v217
    %249 = vmatprep.subr.mxu0 0.0
    %250 = vmatpush1.msra.mxu0 %v218
    %251 = vmatprep.subr.mxu0 0.0
    %252 = vmatpush1.msra.mxu0 %v219
    %253 = vmatprep.subr.mxu0 0.0
    %254 = vmatpush1.msra.mxu0 %v220
    %255 = vmatprep.subr.mxu0 0.0
    %256 = vmatpush1.msra.mxu0 %v221
    %257 = vmatprep.subr.mxu0 0.0
    %258 = vmatpush1.msra.mxu0 %v222
    %259 = vmatprep.subr.mxu0 0.0
    %260 = vmatpush1.msra.mxu0 %v223
    %261 = vmatprep.subr.mxu0 0.0
    %262 = vmatpush1.msra.mxu0 %v224
    %263 = vmatprep.subr.mxu0 0.0
    %264 = vmatpush1.msra.mxu0 %v225
    %265 = vmatprep.subr.mxu0 0.0
    %266 = vmatpush1.msra.mxu0 %v226
    %267 = vmatprep.subr.mxu0 0.0
    %268 = vmatpush1.msra.mxu0 0.0
    %269 = vmatprep.subr.mxu0 0.0
    %270 = vmatpush1.msra.mxu0 0.0
    %271 = vmatprep.subr.mxu0 0.0
    %272 = vmatpush1.msra.mxu0 0.0
    %273 = vmatprep.subr.mxu0 0.0
    %274 = vmatpush1.msra.mxu0 0.0
    %275 = vmatprep.subr.mxu0 0.0
    %276 = vmatpush1.msra.mxu0 0.0
    %277 = vmatprep.subr.mxu0 0.0
    %278 = vmatpush1.msra.mxu0 0.0
    %279 = vmatprep.subr.mxu0 0.0
    %280 = vmatpush1.msra.mxu0 0.0
    %281 = vmatprep.subr.mxu0 0.0
    %282 = vmatpush1.msra.mxu0 0.0
    %283 = vmatprep.subr.mxu0 0.0
    %284 = vmatpush1.msra.mxu0 0.0
    %285 = vmatprep.subr.mxu0 0.0
    %286 = vmatpush1.msra.mxu0 0.0
    %287 = vmatprep.subr.mxu0 0.0
    %288 = vmatpush1.msra.mxu0 0.0
    %289 = vmatprep.subr.mxu0 0.0
    %290 = vmatpush1.msra.mxu0 0.0
    %291 = vmatprep.subr.mxu0 0.0
    %292 = vmatpush1.msra.mxu0 0.0
    %293 = vmatprep.subr.mxu0 0.0
    %294 = vmatpush1.msra.mxu0 0.0
    %295 = vmatprep.subr.mxu0 0.0
    %296 = vmatpush1.msra.mxu0 0.0
    %297 = vmatprep.subr.mxu0 0.0
    %298 = vmatpush1.msra.mxu0 0.0
    %299 = vmatprep.mubr.f32.mxu0 0.0
    %300 = vmatmul.mubr.f32.gmra.mrb[0].mxu0 %v209
    %v301 = vpop.f32.mrb[0].mxu0
    %v302 = vadd.f32 %v233, %v301
    %v303 = vpop.f32.mrb[0].mxu0
    %304 = vdwg.mxu0
    %v305 = vmax.f32 %v302, 0.0
    %s306 = scalar_lea.vmem [#allocation2], 256
    %v307 = vld [vmem:[%s306] sm:$0xff]
    %v308 = vld [vmem:[%s306 + $0x8] sm:$0xff]
    %v309 = vld [vmem:[%s306 + $0x10] sm:$0xff]
    %v310 = vld [vmem:[%s306 + $0x18] sm:$0xff]
    %v311 = vld [vmem:[%s306 + $0x20] sm:$0xff]
    %v312 = vld [vmem:[%s306 + $0x28] sm:$0xff]
    %v313 = vld [vmem:[%s306 + $0x30] sm:$0xff]
    %v314 = vld [vmem:[%s306 + $0x38] sm:$0xff]
    %v315 = vld [vmem:[%s306 + $0x40] sm:$0xff]
    %v316 = vld [vmem:[%s306 + $0x48] sm:$0xff]
    %v317 = vld [vmem:[%s306 + $0x50] sm:$0xff]
    %v318 = vld [vmem:[%s306 + $0x58] sm:$0xff]
    %v319 = vld [vmem:[%s306 + $0x60] sm:$0xff]
    %v320 = vld [vmem:[%s306 + $0x68] sm:$0xff]
    %v321 = vld [vmem:[%s306 + $0x70] sm:$0xff]
    %v322 = vld [vmem:[%s306 + $0x78] sm:$0xff]
    %s323 = scalar_lea.vmem %s3, 3
    %v324 = vld [vmem:[%s323] sm:$0x1]
    %v326 = vlaneseq
    %v327 = vshrl.u32 %v326, 7
    %v328 = vsub.s32 0, %v327
    %v329 = vrot.slane %v324, %v328
    %331 = vmatprep.subr.mxu0 0.0
    %332 = vmatpush1.msra.mxu0 %v307
    %333 = vmatprep.subr.mxu0 0.0
    %334 = vmatpush1.msra.mxu0 %v308
    %335 = vmatprep.subr.mxu0 0.0
    %336 = vmatpush1.msra.mxu0 %v309
    %337 = vmatprep.subr.mxu0 0.0
    %338 = vmatpush1.msra.mxu0 %v310
    %339 = vmatprep.subr.mxu0 0.0
    %340 = vmatpush1.msra.mxu0 %v311
    %341 = vmatprep.subr.mxu0 0.0
    %342 = vmatpush1.msra.mxu0 %v312
    %343 = vmatprep.subr.mxu0 0.0
    %344 = vmatpush1.msra.mxu0 %v313
    %345 = vmatprep.subr.mxu0 0.0
    %346 = vmatpush1.msra.mxu0 %v314
    %347 = vmatprep.subr.mxu0 0.0
    %348 = vmatpush1.msra.mxu0 %v315
    %349 = vmatprep.subr.mxu0 0.0
    %350 = vmatpush1.msra.mxu0 %v316
    %351 = vmatprep.subr.mxu0 0.0
    %352 = vmatpush1.msra.mxu0 %v317
    %353 = vmatprep.subr.mxu0 0.0
    %354 = vmatpush1.msra.mxu0 %v318
    %355 = vmatprep.subr.mxu0 0.0
    %356 = vmatpush1.msra.mxu0 %v319
    %357 = vmatprep.subr.mxu0 0.0
    %358 = vmatpush1.msra.mxu0 %v320
    %359 = vmatprep.subr.mxu0 0.0
    %360 = vmatpush1.msra.mxu0 %v321
    %361 = vmatprep.subr.mxu0 0.0
    %362 = vmatpush1.msra.mxu0 %v322
    %363 = vmatprep.subr.mxu0 0.0
    %364 = vmatpush1.msra.mxu0 0.0
    %365 = vmatprep.subr.mxu0 0.0
    %366 = vmatpush1.msra.mxu0 0.0
    %367 = vmatprep.subr.mxu0 0.0
    %368 = vmatpush1.msra.mxu0 0.0
    %369 = vmatprep.subr.mxu0 0.0
    %370 = vmatpush1.msra.mxu0 0.0
    %371 = vmatprep.subr.mxu0 0.0
    %372 = vmatpush1.msra.mxu0 0.0
    %373 = vmatprep.subr.mxu0 0.0
    %374 = vmatpush1.msra.mxu0 0.0
    %375 = vmatprep.subr.mxu0 0.0
    %376 = vmatpush1.msra.mxu0 0.0
    %377 = vmatprep.subr.mxu0 0.0
    %378 = vmatpush1.msra.mxu0 0.0
    %379 = vmatprep.subr.mxu0 0.0
    %380 = vmatpush1.msra.mxu0 0.0
    %381 = vmatprep.subr.mxu0 0.0
    %382 = vmatpush1.msra.mxu0 0.0
    %383 = vmatprep.subr.mxu0 0.0
    %384 = vmatpush1.msra.mxu0 0.0
    %385 = vmatprep.subr.mxu0 0.0
    %386 = vmatpush1.msra.mxu0 0.0
    %387 = vmatprep.subr.mxu0 0.0
    %388 = vmatpush1.msra.mxu0 0.0
    %389 = vmatprep.subr.mxu0 0.0
    %390 = vmatpush1.msra.mxu0 0.0
    %391 = vmatprep.subr.mxu0 0.0
    %392 = vmatpush1.msra.mxu0 0.0
    %393 = vmatprep.subr.mxu0 0.0
    %394 = vmatpush1.msra.mxu0 0.0
    %395 = vmatprep.mubr.f32.mxu0 0.0
    %396 = vmatmul.mubr.f32.gmra.mrb[0].mxu0 %v305
    %v397 = vpop.f32.mrb[0].mxu0
    %v398 = vadd.f32 %v329, %v397
    %v399 = vpop.f32.mrb[0].mxu0
    %400 = vdwg.mxu0
    %401 = vmax.xlane.f32.xlu0 %v398
    %v402 = vpop.xlane.xlu0 %401
    %v403 = vsub.f32 %v398, %v402
    %v404 = vmul.f32 %v403, 1.442695
    %v405 = vpow.pop %v404
    %406 = vadd.xlane.f32.xlu0 %v405
    %v407 = vpop.xlane.xlu0 %406
    %v408 = vrcp.pop %v407
    %v409 = vmul.f32 %v405, %v408
    %410 = vst [vmem:[%s4] sm:$0xff] %v409
    // Predicated region
    $region22: #{policy_network_forward.1} parent=1 // pred_check
      _
    $region23: #{policy_network_forward.1} parent=1 // pred_check_branch
      %412 = sbr.rel (0) target = $region25
    $region24: #{policy_network_forward.1} parent=1 // pred_region
      _
    $region25: #{policy_network_forward.1} parent=1 // pred_fallthru
      _
    // Predicated region
    $region26: #{policy_network_forward.1} parent=1 // pred_check
      _
    $region27: #{policy_network_forward.1} parent=1 // pred_check_branch
      %414 = sbr.rel (0) target = $region29
    $region28: #{policy_network_forward.1} parent=1 // pred_region
      _
    $region29: #{policy_network_forward.1} parent=1 // pred_fallthru
      _
    %415 = vsyncpa [#allocation3], 1

</llo_original>
